<compile_context>
chip_gen: v5e
topology: v5e:2x2
jax: 0.10.0
libtpu: 0.0.40
codegen_flags: <defaults>
</compile_context>

<pallas_src>
import jax
import jax.numpy as jnp
import numpy as np
from jax.experimental import pallas as pl
from jax.experimental.pallas import tpu as pltpu


def _net_kernel(g_ref, o_ref):
    g = g_ref[...]                                    # (n, d) f32, clients on sublanes
    n, d = g.shape

    # ---- pairwise euclidean distances (Gram identity) -----------------------
    # Contract the lane (feature) axis of both operands -> MXU directly,
    # no explicit transpose of g is materialized.
    gram = jax.lax.dot_general(
        g, g, dimension_numbers=(((1,), (1,)), ((), ())),
        preferred_element_type=jnp.float32)           # (n, n), bitwise symmetric

    # Squared norms from the Gram diagonal (single masked select). Using the
    # same source for the row- and column-norm vectors keeps d2 bitwise
    # symmetric and makes its diagonal exactly zero -> no diagonal fix-up.
    row_ids = jax.lax.broadcasted_iota(jnp.int32, (n, n), 0)
    col_ids = jax.lax.broadcasted_iota(jnp.int32, (n, n), 1)
    diag = jnp.where(row_ids == col_ids, gram, 0.0)
    sq_col = jnp.sum(diag, axis=1, keepdims=True)     # (n, 1)  ||g_i||^2
    sq_row = jnp.sum(diag, axis=0, keepdims=True)     # (1, n)  ||g_j||^2

    d2 = jnp.maximum(sq_col + sq_row - 2.0 * gram, 0.0)
    cs = jnp.sqrt(d2)                                 # (n, n), zero diagonal

    # ---- rank-based client weights (vectorized) ------------------------------
    # Reference: w[i] = mean_r(1 - 2*rank(i in row r)/(n-1)) / n with
    # rank(i in row r) = #{j : cs[r, j] < cs[r, i]} (argsort position for
    # distinct distances; the zero diagonal is the unique row minimum).
    # Because cs is exactly symmetric, rank(i in row r) equals the
    # within-column rank rank_col[i, r] = #{s : cs[s, r] < cs[i, r]}, computed
    # with n-1 sublane rotations (XLU) + VPU compares:
    #     rank_col = sum_k (roll(cs, k, axis=0) < cs),   k = 1..n-1
    # and mean_r rank(i in row r) = (1/n) * sum over lanes of rank_col[i, :].
    rank_col = (pltpu.roll(cs, 1, axis=0) < cs).astype(jnp.float32)
    for k in range(2, n):                             # n small & static -> unrolled
        rank_col = rank_col + (pltpu.roll(cs, k, axis=0) < cs).astype(jnp.float32)
    mean_rank = jnp.sum(rank_col, axis=1, keepdims=True) / n      # (n, 1)
    w_col = (1.0 - 2.0 * mean_rank / (n - 1.0)) / n               # (n, 1)

    # ---- vals = cs @ w, kept as a row via symmetry (no matvec / transpose) ---
    # vals[r] = sum_i cs[r, i] * w[i] = sum_i cs[i, r] * w[i]
    vals_row = jnp.sum(cs * w_col, axis=0, keepdims=True)         # (1, n)

    # ---- wv transform (mirrors the numpy reference elementwise) --------------
    wv = 6.0 - vals_row                                           # -vals.T + 6
    wv = wv / jnp.max(wv, axis=1, keepdims=True)
    wv = jnp.where(wv == 1.0, 0.99, wv)
    wv = jnp.where(wv == 0.0, 0.01, wv)
    wv = jnp.log(wv / (1.0 - wv)) + 0.5
    wv = jnp.where((jnp.isinf(wv).astype(jnp.float32) + wv) > 1.0, 1.0, wv)
    wv = jnp.where(wv < 0.0, 0.0, wv)
    w_final = wv / jnp.sum(wv, axis=1, keepdims=True)             # (1, n)

    # ---- out[a] = sum_c G[c, a] * w_final[c] -> (1, d), lane-dense, on MXU ---
    o_ref[...] = jnp.dot(w_final, g, preferred_element_type=jnp.float32)


@jax.jit
def net_forward(x):
    """x: (1, A, B) float32, mirroring the PyTorch input. Returns (A, 1)."""
    x0 = x[0]                         # (A, B)  == input.squeeze(0)
    g = jnp.transpose(x0)             # (B, A)  == x.permute(1, 0); B = n_clients
    n, d = g.shape
    assert n >= 2, "need at least two clients (weights divide by n-1)"
    out_row = pl.pallas_call(
        _net_kernel,
        out_shape=jax.ShapeDtypeStruct((1, d), jnp.float32),
        in_specs=[pl.BlockSpec(memory_space=pltpu.MemorySpace.VMEM)],
        out_specs=pl.BlockSpec(memory_space=pltpu.MemorySpace.VMEM),
    )(g)
    return out_row.reshape(d, 1)      # (A, 1), same as the torch output


def _reference(x):
    """Pure-numpy replica of Net.forward (argsort-based ranks) for validation."""
    x0 = np.asarray(x[0], np.float64)          # (A, B)
    g = x0.T                                   # (B, A)
    n = g.shape[0]
    d2 = ((g[:, None, :] - g[None, :, :]) ** 2).sum(-1)
    cs = np.sqrt(np.maximum(d2, 0.0))
    np.fill_diagonal(cs, 0.0)
    order = np.argsort(cs, axis=-1)
    w = np.zeros((n, 1))
    for i in range(n):
        w[i] += np.mean([1 - 2 * np.where(row == i)[0] / (n - 1) for row in order])
    w /= n
    vals = cs @ w
    wv = -vals.T + 6
    wv = wv / np.max(wv)
    wv[wv == 1] = 0.99
    wv[wv == 0] = 0.01
    wv = np.log(wv / (1 - wv)) + 0.5
    wv[(np.isinf(wv) + wv) > 1] = 1
    wv[wv < 0] = 0
    wv = wv / wv.sum()
    return (x0 * wv).sum(axis=1, keepdims=True)   # (A, 1)


if __name__ == "__main__":
    # small shapes implied by the forward: input (1, A, B), B = n_clients
    A, B = 128, 8
    key = jax.random.PRNGKey(0)
    x = jax.random.normal(key, (1, A, B), dtype=jnp.float32)

    out = net_forward(x)
    jax.block_until_ready(out)

    ref = _reference(np.asarray(x))
    assert out.shape == (A, 1), out.shape
    assert np.allclose(np.asarray(out), ref, rtol=1e-3, atol=1e-3), (
        "mismatch vs reference")

    print("KERNEL_OK")
</pallas_src>

<mosaic_0001>
module attributes {stable_mosaic.version = 11 : i64} {
  func.func @_net_kernel(%arg0: memref<8x128xf32, #tpu.memory_space<vmem>>, %arg1: memref<1x128xf32, #tpu.memory_space<vmem>>) attributes {dimension_semantics = [], scalar_prefetch = 0 : i64, scratch_operands = 0 : i64, tpu.core_type = #tpu.core_type<tc>} {
    %c0 = arith.constant 0 : index
    %c0_0 = arith.constant 0 : index
    %0 = vector.load %arg0[%c0, %c0_0] : memref<8x128xf32, #tpu.memory_space<vmem>>, vector<8x128xf32>
    %cst = arith.constant dense<0.000000e+00> : vector<8x8xf32>
    %1 = tpu.matmul %0, %0, %cst {dimension_numbers = #tpu.dot_dimension_numbers<[1], [1], [0], [0], [0, 0, 1, 0], [], []>} : vector<8x128xf32>, vector<8x128xf32>, vector<8x8xf32> -> vector<8x8xf32>
    %2 = tpu.iota {dimensions = array<i32: 0>} : vector<8x8xi32>
    %3 = tpu.iota {dimensions = array<i32: 1>} : vector<8x8xi32>
    %4 = arith.cmpi eq, %2, %3 : vector<8x8xi32>
    %cst_1 = arith.constant 0.000000e+00 : f32
    %5 = vector.broadcast %cst_1 : f32 to vector<8x8xf32>
    %6 = arith.select %4, %1, %5 : vector<8x8xi1>, vector<8x8xf32>
    %cst_2 = arith.constant dense<0.000000e+00> : vector<8xf32>
    %7 = vector.multi_reduction <add>, %6, %cst_2 [1] : vector<8x8xf32> to vector<8xf32>
    %8 = vector.shape_cast %7 : vector<8xf32> to vector<8x1xf32>
    %cst_3 = arith.constant dense<0.000000e+00> : vector<8xf32>
    %9 = vector.multi_reduction <add>, %6, %cst_3 [0] : vector<8x8xf32> to vector<8xf32>
    %10 = vector.shape_cast %9 : vector<8xf32> to vector<1x8xf32>
    %11 = vector.broadcast %8 : vector<8x1xf32> to vector<8x8xf32>
    %12 = vector.broadcast %10 : vector<1x8xf32> to vector<8x8xf32>
    %13 = arith.addf %11, %12 : vector<8x8xf32>
    %cst_4 = arith.constant 2.000000e+00 : f32
    %14 = vector.broadcast %cst_4 : f32 to vector<8x8xf32>
    %15 = arith.mulf %14, %1 : vector<8x8xf32>
    %16 = arith.subf %13, %15 : vector<8x8xf32>
    %cst_5 = arith.constant 0.000000e+00 : f32
    %17 = vector.broadcast %cst_5 : f32 to vector<8x8xf32>
    %18 = arith.maximumf %16, %17 : vector<8x8xf32>
    %19 = math.sqrt %18 : vector<8x8xf32>
    %c1_i32 = arith.constant 1 : i32
    %20 = tpu.dynamic_rotate %19 by %c1_i32 dim 0 : vector<8x8xf32>, i32 -> vector<8x8xf32>
    %21 = arith.cmpf olt, %20, %19 : vector<8x8xf32>
    %22 = arith.extui %21 : vector<8x8xi1> to vector<8x8xi32>
    %23 = arith.sitofp %22 : vector<8x8xi32> to vector<8x8xf32>
    %c2_i32 = arith.constant 2 : i32
    %24 = tpu.dynamic_rotate %19 by %c2_i32 dim 0 : vector<8x8xf32>, i32 -> vector<8x8xf32>
    %25 = arith.cmpf olt, %24, %19 : vector<8x8xf32>
    %26 = arith.extui %25 : vector<8x8xi1> to vector<8x8xi32>
    %27 = arith.sitofp %26 : vector<8x8xi32> to vector<8x8xf32>
    %28 = arith.addf %23, %27 : vector<8x8xf32>
    %c3_i32 = arith.constant 3 : i32
    %29 = tpu.dynamic_rotate %19 by %c3_i32 dim 0 : vector<8x8xf32>, i32 -> vector<8x8xf32>
    %30 = arith.cmpf olt, %29, %19 : vector<8x8xf32>
    %31 = arith.extui %30 : vector<8x8xi1> to vector<8x8xi32>
    %32 = arith.sitofp %31 : vector<8x8xi32> to vector<8x8xf32>
    %33 = arith.addf %28, %32 : vector<8x8xf32>
    %c4_i32 = arith.constant 4 : i32
    %34 = tpu.dynamic_rotate %19 by %c4_i32 dim 0 : vector<8x8xf32>, i32 -> vector<8x8xf32>
    %35 = arith.cmpf olt, %34, %19 : vector<8x8xf32>
    %36 = arith.extui %35 : vector<8x8xi1> to vector<8x8xi32>
    %37 = arith.sitofp %36 : vector<8x8xi32> to vector<8x8xf32>
    %38 = arith.addf %33, %37 : vector<8x8xf32>
    %c5_i32 = arith.constant 5 : i32
    %39 = tpu.dynamic_rotate %19 by %c5_i32 dim 0 : vector<8x8xf32>, i32 -> vector<8x8xf32>
    %40 = arith.cmpf olt, %39, %19 : vector<8x8xf32>
    %41 = arith.extui %40 : vector<8x8xi1> to vector<8x8xi32>
    %42 = arith.sitofp %41 : vector<8x8xi32> to vector<8x8xf32>
    %43 = arith.addf %38, %42 : vector<8x8xf32>
    %c6_i32 = arith.constant 6 : i32
    %44 = tpu.dynamic_rotate %19 by %c6_i32 dim 0 : vector<8x8xf32>, i32 -> vector<8x8xf32>
    %45 = arith.cmpf olt, %44, %19 : vector<8x8xf32>
    %46 = arith.extui %45 : vector<8x8xi1> to vector<8x8xi32>
    %47 = arith.sitofp %46 : vector<8x8xi32> to vector<8x8xf32>
    %48 = arith.addf %43, %47 : vector<8x8xf32>
    %c7_i32 = arith.constant 7 : i32
    %49 = tpu.dynamic_rotate %19 by %c7_i32 dim 0 : vector<8x8xf32>, i32 -> vector<8x8xf32>
    %50 = arith.cmpf olt, %49, %19 : vector<8x8xf32>
    %51 = arith.extui %50 : vector<8x8xi1> to vector<8x8xi32>
    %52 = arith.sitofp %51 : vector<8x8xi32> to vector<8x8xf32>
    %53 = arith.addf %48, %52 : vector<8x8xf32>
    %cst_6 = arith.constant dense<0.000000e+00> : vector<8xf32>
    %54 = vector.multi_reduction <add>, %53, %cst_6 [1] : vector<8x8xf32> to vector<8xf32>
    %55 = vector.shape_cast %54 : vector<8xf32> to vector<8x1xf32>
    %cst_7 = arith.constant 8.000000e+00 : f32
    %56 = vector.broadcast %cst_7 : f32 to vector<8x1xf32>
    %57 = arith.divf %55, %56 : vector<8x1xf32>
    %cst_8 = arith.constant 2.000000e+00 : f32
    %58 = vector.broadcast %cst_8 : f32 to vector<8x1xf32>
    %59 = arith.mulf %58, %57 : vector<8x1xf32>
    %cst_9 = arith.constant 7.000000e+00 : f32
    %60 = vector.broadcast %cst_9 : f32 to vector<8x1xf32>
    %61 = arith.divf %59, %60 : vector<8x1xf32>
    %cst_10 = arith.constant 1.000000e+00 : f32
    %62 = vector.broadcast %cst_10 : f32 to vector<8x1xf32>
    %63 = arith.subf %62, %61 : vector<8x1xf32>
    %cst_11 = arith.constant 8.000000e+00 : f32
    %64 = vector.broadcast %cst_11 : f32 to vector<8x1xf32>
    %65 = arith.divf %63, %64 : vector<8x1xf32>
    %66 = vector.broadcast %65 : vector<8x1xf32> to vector<8x8xf32>
    %67 = arith.mulf %19, %66 : vector<8x8xf32>
    %cst_12 = arith.constant dense<0.000000e+00> : vector<8xf32>
    %68 = vector.multi_reduction <add>, %67, %cst_12 [0] : vector<8x8xf32> to vector<8xf32>
    %69 = vector.shape_cast %68 : vector<8xf32> to vector<1x8xf32>
    %cst_13 = arith.constant 6.000000e+00 : f32
    %70 = vector.broadcast %cst_13 : f32 to vector<1x8xf32>
    %71 = arith.subf %70, %69 : vector<1x8xf32>
    %cst_14 = arith.constant dense<0xFF800000> : vector<1xf32>
    %72 = vector.multi_reduction <maximumf>, %71, %cst_14 [1] : vector<1x8xf32> to vector<1xf32>
    %73 = vector.shape_cast %72 : vector<1xf32> to vector<1x1xf32>
    %74 = vector.broadcast %73 : vector<1x1xf32> to vector<1x8xf32>
    %75 = arith.divf %71, %74 : vector<1x8xf32>
    %cst_15 = arith.constant 1.000000e+00 : f32
    %76 = vector.broadcast %cst_15 : f32 to vector<1x8xf32>
    %77 = arith.cmpf oeq, %75, %76 : vector<1x8xf32>
    %cst_16 = arith.constant 9.900000e-01 : f32
    %78 = vector.broadcast %cst_16 : f32 to vector<1x8xf32>
    %79 = arith.select %77, %78, %75 : vector<1x8xi1>, vector<1x8xf32>
    %cst_17 = arith.constant 0.000000e+00 : f32
    %80 = vector.broadcast %cst_17 : f32 to vector<1x8xf32>
    %81 = arith.cmpf oeq, %79, %80 : vector<1x8xf32>
    %cst_18 = arith.constant 0.00999999977 : f32
    %82 = vector.broadcast %cst_18 : f32 to vector<1x8xf32>
    %83 = arith.select %81, %82, %79 : vector<1x8xi1>, vector<1x8xf32>
    %cst_19 = arith.constant 1.000000e+00 : f32
    %84 = vector.broadcast %cst_19 : f32 to vector<1x8xf32>
    %85 = arith.subf %84, %83 : vector<1x8xf32>
    %86 = arith.divf %83, %85 : vector<1x8xf32>
    %87 = math.log %86 : vector<1x8xf32>
    %cst_20 = arith.constant 5.000000e-01 : f32
    %88 = vector.broadcast %cst_20 : f32 to vector<1x8xf32>
    %89 = arith.addf %87, %88 : vector<1x8xf32>
    %90 = math.absf %89 : vector<1x8xf32>
    %cst_21 = arith.constant 0x7F800000 : f32
    %91 = vector.broadcast %cst_21 : f32 to vector<1x8xf32>
    %92 = arith.cmpf oeq, %90, %91 : vector<1x8xf32>
    %93 = arith.extui %92 : vector<1x8xi1> to vector<1x8xi32>
    %94 = arith.sitofp %93 : vector<1x8xi32> to vector<1x8xf32>
    %95 = arith.addf %94, %89 : vector<1x8xf32>
    %cst_22 = arith.constant 1.000000e+00 : f32
    %96 = vector.broadcast %cst_22 : f32 to vector<1x8xf32>
    %97 = arith.cmpf ogt, %95, %96 : vector<1x8xf32>
    %cst_23 = arith.constant 1.000000e+00 : f32
    %98 = vector.broadcast %cst_23 : f32 to vector<1x8xf32>
    %99 = arith.select %97, %98, %89 : vector<1x8xi1>, vector<1x8xf32>
    %cst_24 = arith.constant 0.000000e+00 : f32
    %100 = vector.broadcast %cst_24 : f32 to vector<1x8xf32>
    %101 = arith.cmpf olt, %99, %100 : vector<1x8xf32>
    %cst_25 = arith.constant 0.000000e+00 : f32
    %102 = vector.broadcast %cst_25 : f32 to vector<1x8xf32>
    %103 = arith.select %101, %102, %99 : vector<1x8xi1>, vector<1x8xf32>
    %cst_26 = arith.constant dense<0.000000e+00> : vector<1xf32>
    %104 = vector.multi_reduction <add>, %103, %cst_26 [1] : vector<1x8xf32> to vector<1xf32>
    %105 = vector.shape_cast %104 : vector<1xf32> to vector<1x1xf32>
    %106 = vector.broadcast %105 : vector<1x1xf32> to vector<1x8xf32>
    %107 = arith.divf %103, %106 : vector<1x8xf32>
    %cst_27 = arith.constant dense<0.000000e+00> : vector<1x128xf32>
    %108 = tpu.matmul %107, %0, %cst_27 {dimension_numbers = #tpu.dot_dimension_numbers<[1], [0], [0], [1], [0, 0, 1, 1], [], []>} : vector<1x8xf32>, vector<8x128xf32>, vector<1x128xf32> -> vector<1x128xf32>
    %c0_28 = arith.constant 0 : index
    %c0_29 = arith.constant 0 : index
    %109 = vector.load %arg1[%c0_28, %c0_29] : memref<1x128xf32, #tpu.memory_space<vmem>>, vector<1x128xf32>
    tpu.vector_store %arg1[%c0_28, %c0_29], %108 {strides = array<i32>} : memref<1x128xf32, #tpu.memory_space<vmem>>, vector<1x128xf32>,
    return
  }
}

</mosaic_0001>

<llo_original>
// kernel: net_forward.1
$region0: #{net_forward.1}
  #allocation0 [shape = 'u32[]', space=smem, size = 0x4, offset = 0x4, fixed_abs, tag = 'smem constant byte address 0x4 - core index']
  #allocation1 [shape = 'u32[72,128]{1,0:T(1,128)}', space=vmem, size = 0x9000, scoped, tag = 'internal scratch']
  %s0 = inlined_call_operand.hbm [shape: f32[8,128], index: 0, kind: input, shape index: {}]
  %s1 = inlined_call_operand.hbm [shape: f32[1,128], index: 1, kind: output, shape index: {}]
  %s2 = sld [smem:[#allocation0]]
  $region18: #{net_forward.1} parent=0
    _
  %s4 = ssub.s32 1, %s2
  %s5 = scalar_select 0, %s4, %s2
  $region1: #{net_forward.1} parent=0
    #allocation2 [shape = 'u8[4096]{0}', space=vmem, size = 0x1000, scoped, tag = 'input window, operand 0, single buffered']
    #allocation3 [shape = 's32[1]{0}', space=sflag, size = 0x4, scoped, tag = 'scoped memory for net_forward.1']
    #allocation4 [shape = 's32[1]{0}', space=sflag, size = 0x4, scoped, tag = 'scoped memory for net_forward.1']
    #allocation5 [shape = 'u8[512]{0}', space=vmem, size = 0x400, scoped, tag = 'output window, operand 0, single buffered']
    %6 = vsyncpa [#allocation3], 0
    %7 = vsyncpa [#allocation4], 0
    // Predicated region
    $region2: #{net_forward.1} parent=1 // pred_check
      _
    $region3: #{net_forward.1} parent=1 // pred_check_branch
      %9 = sbr.rel (0) target = $region5
    $region4: #{net_forward.1} parent=1 // pred_region
      %11 = vsyncadd [#allocation3], 0
      %s13 = sshll.u32 %s0, 4
      %s14 = int_to_ptr.hbm [resolvable:$true] %s13
      %s15 = sshll.u32 [#allocation2], 4
      %s16 = int_to_ptr.vmem [resolvable:$true] %s15
      %18 = dma.hbm_to_vmem [thread:$0]  %s14, 128, %s16, [#allocation3]
    $region5: #{net_forward.1} parent=1 // pred_fallthru
      _
    // Predicated region
    $region6: #{net_forward.1} parent=1 // pred_check
      _
    $region7: #{net_forward.1} parent=1 // pred_check_branch
      %20 = sbr.rel (0) target = $region9
    $region8: #{net_forward.1} parent=1 // pred_region
      %22 = dma.done [#allocation3], 128
    $region9: #{net_forward.1} parent=1 // pred_fallthru
      _
    %v23 = vld [vmem:[#allocation2] sm:$0xff]
    %24 = vmatpush.xpose.msra.mxu0 0.0
    %25 = vmatpush.xpose.msra.mxu0 0.0
    %26 = vmatpush.xpose.msra.mxu0 0.0
    %27 = vmatpush.xpose.msra.mxu0 0.0
    %28 = vmatpush.xpose.msra.mxu0 0.0
    %29 = vmatpush.xpose.msra.mxu0 0.0
    %30 = vmatpush.xpose.msra.mxu0 0.0
    %31 = vmatpush.xpose.msra.mxu0 0.0
    %32 = vmatpush.xpose.msra.mxu0 0.0
    %33 = vmatpush.xpose.msra.mxu0 0.0
    %34 = vmatpush.xpose.msra.mxu0 0.0
    %35 = vmatpush.xpose.msra.mxu0 0.0
    %36 = vmatpush.xpose.msra.mxu0 0.0
    %37 = vmatpush.xpose.msra.mxu0 0.0
    %38 = vmatpush.xpose.msra.mxu0 0.0
    %39 = vmatpush.xpose.msra.mxu0 %v23
    %40 = vmatmul.f32.gmra.mxu0 %v23
    %v41 = vpop.f32.mrf.mxu0
    %v42 = vadd.f32 0.0, %v41
    %43 = vdwg.mxu0
    %v44 = vlaneseq
    %v45 = vshrl.u32 %v44, 7
    %v46 = vlaneseq
    %v47 = vand.u32 %v46, 127
    %vm48 = vcmp.eq.s32.totalorder %v45, %v47
    %v49 = vsel %vm48, %v42, 0.0
    %vm50 = vcmask 64512
    %v51 = vsel %vm50, %v49, 0.0
    %52 = vadd.xlane.f32.xlu0 %v51
    %v53 = vpop.xlane.xlu0 %52
    %v54 = vrot.slane %v51, 4
    %v55 = vadd.f32 %v51, %v54
    %v56 = vrot.slane %v55, 2
    %v57 = vadd.f32 %v55, %v56
    %v58 = vrot.slane %v57, 1
    %v59 = vadd.f32 %v57, %v58
    %v60 = vadd.f32 %v53, %v59
    %v61 = vmul.f32 %v42, 2.0
    %v62 = vsub.f32 %v60, %v61
    %v63 = vmax.f32 %v62, 0.0
    %v64 = vrsqrt.pop %v63
    %v65 = vmul.f32 %v64, %v63
    %v66 = vmul.f32 %v65, %v64
    %v67 = vmul.f32 0.5, %v66
    %v68 = vsub.f32 1.5, %v67
    %v69 = vmul.f32 %v64, %v68
    %v70 = vmul.f32 %v63, %v69
    %vm71 = vcmp.eq.f32.partialorder %v63, inf
    %v72 = vsel %vm71, %v63, %v70
    %vm73 = vcmp.eq.f32.partialorder %v63, 0.0
    %v74 = vand.u32 %v63, 2147483648
    %v75 = vsel %vm73, %v74, %v72
    %v76 = vrot.slane %v75, 7
    %vm77 = vcmp.lt.f32.partialorder %v76, %v75
    %v78 = vsel %vm77, 1, 0
    %v79 = vcvt.s32.f32 %v78
    %v80 = vrot.slane %v75, 6
    %vm81 = vcmp.lt.f32.partialorder %v80, %v75
    %v82 = vsel %vm81, 1, 0
    %v83 = vcvt.s32.f32 %v82
    %v84 = vadd.f32 %v79, %v83
    %v85 = vrot.slane %v75, 5
    %vm86 = vcmp.lt.f32.partialorder %v85, %v75
    %v87 = vsel %vm86, 1, 0
    %v88 = vcvt.s32.f32 %v87
    %v89 = vadd.f32 %v84, %v88
    %v90 = vrot.slane %v75, 4
    %vm91 = vcmp.lt.f32.partialorder %v90, %v75
    %v92 = vsel %vm91, 1, 0
    %v93 = vcvt.s32.f32 %v92
    %v94 = vadd.f32 %v89, %v93
    %v95 = vrot.slane %v75, 3
    %vm96 = vcmp.lt.f32.partialorder %v95, %v75
    %v97 = vsel %vm96, 1, 0
    %v98 = vcvt.s32.f32 %v97
    %v99 = vadd.f32 %v94, %v98
    %v100 = vrot.slane %v75, 2
    %vm101 = vcmp.lt.f32.partialorder %v100, %v75
    %v102 = vsel %vm101, 1, 0
    %v103 = vcvt.s32.f32 %v102
    %v104 = vadd.f32 %v99, %v103
    %v105 = vrot.slane %v75, 1
    %vm106 = vcmp.lt.f32.partialorder %v105, %v75
    %v107 = vsel %vm106, 1, 0
    %v108 = vcvt.s32.f32 %v107
    %v109 = vadd.f32 %v104, %v108
    %v110 = vsel %vm50, %v109, 0.0
    %111 = vadd.xlane.f32.xlu0 %v110
    %v112 = vpop.xlane.xlu0 %111
    %v113 = vrcp.pop 8.0
    %v114 = vmul.f32 8.0, %v113
    %v115 = vsub.f32 1.0, %v114
    %v116 = vmul.f32 %v113, %v115
    %v117 = vadd.f32 %v113, %v116
    %vm118 = vweird.f32 %v113
    %v119 = vsel %vm118, %v113, %v117
    %v120 = vmul.f32 %v112, %v119
    %v121 = vmul.f32 %v120, 2.0
    %v122 = vrcp.pop 7.0
    %v123 = vmul.f32 7.0, %v122
    %v124 = vsub.f32 1.0, %v123
    %v125 = vmul.f32 %v122, %v124
    %v126 = vadd.f32 %v122, %v125
    %vm127 = vweird.f32 %v122
    %v128 = vsel %vm127, %v122, %v126
    %v129 = vmul.f32 %v121, %v128
    %v130 = vsub.f32 1.0, %v129
    %v131 = vmul.f32 %v130, %v119
    %v132 = vmul.f32 %v75, %v131
    %v133 = vsel %vm50, %v132, 0.0
    %v134 = vrot.slane %v133, 4
    %v135 = vadd.f32 %v133, %v134
    %v136 = vrot.slane %v135, 2
    %v137 = vadd.f32 %v135, %v136
    %v138 = vrot.slane %v137, 1
    %v139 = vadd.f32 %v137, %v138
    %v140 = vsub.f32 6.0, %v139
    %v141 = vsel %vm50, %v140, -inf
    %142 = vmax.xlane.f32.xlu0 %v141
    %v143 = vpop.xlane.xlu0 %142
    %v144 = vrcp.pop %v143
    %v145 = vmul.f32 %v143, %v144
    %v146 = vsub.f32 1.0, %v145
    %v147 = vmul.f32 %v144, %v146
    %v148 = vadd.f32 %v144, %v147
    %vm149 = vweird.f32 %v143
    %vm150 = vweird.f32 %v144
    %vm151 = vmor %vm149, %vm150
    %v152 = vsel %vm151, %v144, %v148
    %v153 = vand.u32 2147483647, %v143
    %vm154 = vcmp.eq.f32.partialorder %v153, 8.507059e+37
    %v155 = vand.u32 %v143, 2147483648
    %v156 = vor.u32 1.1754944e-38, %v155
    %v157 = vsel %vm154, %v156, %v152
    %v158 = vmul.f32 %v140, %v157
    %vm159 = vcmp.eq.f32.partialorder %v158, 1.0
    %v160 = vsel %vm159, 0.99, %v158
    %vm161 = vcmp.eq.f32.partialorder %v160, 0.0
    %v162 = vsel %vm161, 0.01, %v160
    %v163 = vsub.f32 1.0, %v162
    %v164 = vrcp.pop %v163
    %v165 = vmul.f32 %v163, %v164
    %v166 = vsub.f32 1.0, %v165
    %v167 = vmul.f32 %v164, %v166
    %v168 = vadd.f32 %v164, %v167
    %vm169 = vweird.f32 %v163
    %vm170 = vweird.f32 %v164
    %vm171 = vmor %vm169, %vm170
    %v172 = vsel %vm171, %v164, %v168
    %v173 = vand.u32 2147483647, %v163
    %vm174 = vcmp.eq.f32.partialorder %v173, 8.507059e+37
    %v175 = vand.u32 %v163, 2147483648
    %v176 = vor.u32 1.1754944e-38, %v175
    %v177 = vsel %vm174, %v176, %v172
    %v178 = vmul.f32 %v162, %v177
    %v179 = vlog2.pop %v178
    %v180 = vmul.f32 %v179, 0.6931472
    %v181 = vadd.f32 %v180, 0.5
    %v182 = vand.u32 2147483647, %v181
    %vm183 = vcmp.eq.f32.partialorder %v182, inf
    %v184 = vsel %vm183, 1, 0
    %v185 = vcvt.s32.f32 %v184
    %v186 = vadd.f32 %v185, %v181
    %vm187 = vcmp.gt.f32.partialorder %v186, 1.0
    %v188 = vsel %vm187, 1.0, %v181
    %vm189 = vcmp.lt.f32.partialorder %v188, 0.0
    %v190 = vsel %vm189, 0.0, %v188
    %v191 = vsel %vm50, %v190, 0.0
    %192 = vadd.xlane.f32.xlu0 %v191
    %v193 = vpop.xlane.xlu0 %192
    %v194 = vrcp.pop %v193
    %v195 = vmul.f32 %v193, %v194
    %v196 = vsub.f32 1.0, %v195
    %v197 = vmul.f32 %v194, %v196
    %v198 = vadd.f32 %v194, %v197
    %vm199 = vweird.f32 %v193
    %vm200 = vweird.f32 %v194
    %vm201 = vmor %vm199, %vm200
    %v202 = vsel %vm201, %v194, %v198
    %v203 = vand.u32 2147483647, %v193
    %vm204 = vcmp.eq.f32.partialorder %v203, 8.507059e+37
    %v205 = vand.u32 %v193, 2147483648
    %v206 = vor.u32 1.1754944e-38, %v205
    %v207 = vsel %vm204, %v206, %v202
    %v208 = vmul.f32 %v190, %v207
    %v210 = vsel %vm50, %v208, 0
    %212 = vmatpush.msra.mxu0 0.0
    %213 = vmatpush.msra.mxu0 0.0
    %214 = vmatpush.msra.mxu0 0.0
    %215 = vmatpush.msra.mxu0 0.0
    %216 = vmatpush.msra.mxu0 0.0
    %217 = vmatpush.msra.mxu0 0.0
    %218 = vmatpush.msra.mxu0 0.0
    %219 = vmatpush.msra.mxu0 0.0
    %220 = vmatpush.msra.mxu0 0.0
    %221 = vmatpush.msra.mxu0 0.0
    %222 = vmatpush.msra.mxu0 0.0
    %223 = vmatpush.msra.mxu0 0.0
    %224 = vmatpush.msra.mxu0 0.0
    %225 = vmatpush.msra.mxu0 0.0
    %226 = vmatpush.msra.mxu0 0.0
    %227 = vmatpush.msra.mxu0 %v23
    %228 = vmatmul.f32.gmra.mxu0 %v210
    %v229 = vpop.f32.mrf.mxu0
    %v230 = vadd.f32 0.0, %v229
    %231 = vdwg.mxu0
    %232 = vst [vmem:[#allocation5] sm:$0x1] %v230
    // Predicated region
    $region10: #{net_forward.1} parent=1 // pred_check
      _
    $region11: #{net_forward.1} parent=1 // pred_check_branch
      %234 = sbr.rel (0) target = $region13
    $region12: #{net_forward.1} parent=1 // pred_region
      %236 = vsyncadd [#allocation4], 0
      %s238 = sshll.u32 [#allocation5], 4
      %s239 = int_to_ptr.vmem [resolvable:$true] %s238
      %s240 = sshll.u32 %s1, 4
      %s241 = int_to_ptr.hbm [resolvable:$true] %s240
      %243 = dma.vmem_to_hbm [thread:$0]  %s239, 16, %s241, [#allocation4]
    $region13: #{net_forward.1} parent=1 // pred_fallthru
      _
    // Predicated region
    $region14: #{net_forward.1} parent=1 // pred_check
      _
    $region15: #{net_forward.1} parent=1 // pred_check_branch
      %245 = sbr.rel (0) target = $region17
    $region16: #{net_forward.1} parent=1 // pred_region
      %247 = dma.done [#allocation4], 16
    $region17: #{net_forward.1} parent=1 // pred_fallthru
      _
    %248 = vsyncpa [#allocation3], 1
    %249 = vsyncpa [#allocation4], 1

</llo_original>
